<compile_context>
chip_gen: v7x
topology: tpu7x:2x2x1
jax: 0.10.0
libtpu: 0.0.40
codegen_flags: <defaults>
</compile_context>

<pallas_src>
import jax
import jax.numpy as jnp
from jax import lax
from jax.experimental import pallas as pl
from jax.experimental.pallas import tpu as pltpu

LANE = 128


def _round_up(x, m):
    return ((x + m - 1) // m) * m


def _pad2(x, rows, cols):
    r, c = x.shape
    return jnp.pad(x, ((0, rows - r), (0, cols - c)))


def _vmem_limit(block_bytes, scratch_bytes=0):
    # BlockSpec inputs/outputs are double-buffered by default; add headroom,
    # clamp to a budget that is also valid on v7x (64 MiB physical VMEM).
    need = 2 * block_bytes + scratch_bytes + (8 << 20)
    return int(min(max(need, 16 << 20), 64 << 20))


# --------------------------------------------------------------------------
# Pass 1: state embedding, produced directly in transposed (D_emb, ts) layout
# so the pairwise matmul in pass 2 is a canonical (M,K)x(K,N) dot.
# --------------------------------------------------------------------------
def state_embed_kernel(state_ref, wsT_ref, bsT_ref, out_ref):
    # (ed_p, ts) = wsT (ed_p, sd_p) contracted with state (ts, sd_p) on the
    # shared feature dim (A @ B^T form; only runs once per state tile).
    e = lax.dot_general(
        wsT_ref[...], state_ref[...],
        dimension_numbers=(((1,), (1,)), ((), ())),
        preferred_element_type=jnp.float32)
    e = jnp.maximum(e + bsT_ref[...], 0.0)          # bias broadcasts over lanes
    out_ref[...] = e.astype(out_ref.dtype)


# --------------------------------------------------------------------------
# Pass 2: pairwise values.  The goal embedding for the current goal tile is
# computed only at the first inner (state) step and cached in VMEM scratch;
# every step then does one canonical MXU matmul (tg, D) @ (D, ts).
# --------------------------------------------------------------------------
def pairwise_kernel(obj_ref, ins_ref, wgo_ref, wgi_ref, bg_ref, sT_ref,
                    out_ref, g_scratch):
    @pl.when(pl.program_id(1) == 0)
    def _():
        # goal_model: split-weight linear (== Linear(concat(obj, ins))) + ReLU.
        e = (lax.dot_general(obj_ref[...], wgo_ref[...],
                             dimension_numbers=(((1,), (0,)), ((), ())),
                             preferred_element_type=jnp.float32)
             + lax.dot_general(ins_ref[...], wgi_ref[...],
                               dimension_numbers=(((1,), (0,)), ((), ())),
                               preferred_element_type=jnp.float32)
             + bg_ref[...])
        g_scratch[...] = jnp.maximum(e, 0.0).astype(g_scratch.dtype)

    # Dominant matmul: cached goal embedding (tg, D) x streamed s_embT (D, ts).
    out_ref[...] = lax.dot_general(
        g_scratch[...], sT_ref[...],
        dimension_numbers=(((1,), (0,)), ((), ())),
        preferred_element_type=jnp.float32).astype(out_ref.dtype)


# --------------------------------------------------------------------------
# Parameter preparation (one-time): pad, transpose, cast.
# --------------------------------------------------------------------------
def init_params(key, state_dim, obj_dim, instr_dim, embed_dim):
    k1, k2, k3, k4, k5 = jax.random.split(key, 5)
    ws = jax.random.normal(k1, (state_dim, embed_dim), jnp.float32) * 0.1
    bs = jax.random.normal(k2, (1, embed_dim), jnp.float32) * 0.01
    wg_obj = jax.random.normal(k3, (obj_dim, embed_dim), jnp.float32) * 0.1
    wg_ins = jax.random.normal(k4, (instr_dim, embed_dim), jnp.float32) * 0.1
    bg = jax.random.normal(k5, (1, embed_dim), jnp.float32) * 0.01
    return ws, bs, wg_obj, wg_ins, bg


def prepare_params(params, compute_dtype=jnp.float32):
    """Pad/transpose/cast parameters once (not per forward call)."""
    ws, bs, wg_obj, wg_ins, bg = params
    state_dim, embed_dim = ws.shape
    obj_dim = wg_obj.shape[0]
    instr_dim = wg_ins.shape[0]
    cd = jnp.dtype(compute_dtype)

    sd_p = _round_up(state_dim, LANE)
    od_p = _round_up(obj_dim, LANE)
    id_p = _round_up(instr_dim, LANE)
    ed_p = _round_up(embed_dim, LANE)

    return dict(
        compute_dtype=cd,
        state_dim=state_dim, obj_dim=obj_dim, instr_dim=instr_dim,
        embed_dim=embed_dim,
        sd_p=sd_p, od_p=od_p, id_p=id_p, ed_p=ed_p,
        # state_model weights, pre-transposed so pass 1 writes s_embT directly.
        wsT=_pad2(ws.T, ed_p, sd_p).astype(cd),       # (ed_p, sd_p)
        bsT=_pad2(bs.T, ed_p, 1),                     # (ed_p, 1)  f32
        # goal_model split weights (== Linear on concat(objects, instructions)).
        wgo=_pad2(wg_obj, od_p, ed_p).astype(cd),     # (od_p, ed_p)
        wgi=_pad2(wg_ins, id_p, ed_p).astype(cd),     # (id_p, ed_p)
        bg=_pad2(bg, 1, ed_p),                        # (1, ed_p)  f32
    )


# --------------------------------------------------------------------------
# Forward wrapper.
# --------------------------------------------------------------------------
def compositor_forward(state, objects, instructions, prepared, *,
                       tile_states=None, tile_goals=None):
    p = prepared
    cd = p["compute_dtype"]
    csz = cd.itemsize

    num_states, state_dim = state.shape
    num_goals, obj_dim = objects.shape
    n_ins, instr_dim = instructions.shape
    assert state_dim == p["state_dim"]
    assert obj_dim == p["obj_dim"] and instr_dim == p["instr_dim"]
    assert n_ins == num_goals

    sd_p, od_p, id_p, ed_p = p["sd_p"], p["od_p"], p["id_p"], p["ed_p"]

    # Tile sizes: bound padding waste (round to 128, cap at 512).  For tiny
    # goal counts keep a sublane-minimal tile (native sublane tile for cd).
    ts = tile_states if tile_states is not None else min(
        512, _round_up(num_states, LANE))
    tg_min = 8 * (4 // csz)            # 8 for f32 operands, 16 for bf16
    if tile_goals is not None:
        tg = tile_goals
    elif num_goals <= tg_min:
        tg = tg_min
    else:
        tg = min(512, _round_up(num_goals, LANE))

    ns_p = _round_up(num_states, ts)
    ng_p = _round_up(num_goals, tg)

    # Runtime inputs: pad rows to tile multiples, features to lane multiples,
    # cast the MXU operands to compute_dtype (zero padding keeps math exact).
    state_p = _pad2(state, ns_p, sd_p).astype(cd)
    obj_p = _pad2(objects, ng_p, od_p).astype(cd)
    ins_p = _pad2(instructions, ng_p, id_p).astype(cd)

    # -------- Pass 1: s_embT = ReLU(state @ ws + bs)^T, shape (ed_p, ns_p) ----
    se_blocks = (ts * sd_p * csz + ed_p * sd_p * csz + ed_p * 4
                 + ed_p * ts * csz)
    s_embT = pl.pallas_call(
        state_embed_kernel,
        out_shape=jax.ShapeDtypeStruct((ed_p, ns_p), cd),
        grid=(ns_p // ts,),
        in_specs=[
            pl.BlockSpec((ts, sd_p), lambda j: (j, 0)),      # state tile
            pl.BlockSpec((ed_p, sd_p), lambda j: (0, 0)),    # wsT (resident)
            pl.BlockSpec((ed_p, 1), lambda j: (0, 0)),       # bsT (resident)
        ],
        out_specs=pl.BlockSpec((ed_p, ts), lambda j: (0, j)),
        compiler_params=pltpu.CompilerParams(
            dimension_semantics=("parallel",),
            vmem_limit_bytes=_vmem_limit(se_blocks)),
    )(state_p, p["wsT"], p["bsT"])

    # -------- Pass 2: values[g, s] = g_emb @ s_embT --------------------------
    pw_blocks = (tg * od_p * csz + tg * id_p * csz + od_p * ed_p * csz
                 + id_p * ed_p * csz + ed_p * 4 + ed_p * ts * csz
                 + tg * ts * 4)
    pw_scratch = tg * ed_p * csz
    out_p = pl.pallas_call(
        pairwise_kernel,
        out_shape=jax.ShapeDtypeStruct((ng_p, ns_p), jnp.float32),
        grid=(ng_p // tg, ns_p // ts),
        in_specs=[
            pl.BlockSpec((tg, od_p), lambda i, j: (i, 0)),    # objects tile
            pl.BlockSpec((tg, id_p), lambda i, j: (i, 0)),    # instructions tile
            pl.BlockSpec((od_p, ed_p), lambda i, j: (0, 0)),  # wg_obj (resident)
            pl.BlockSpec((id_p, ed_p), lambda i, j: (0, 0)),  # wg_ins (resident)
            pl.BlockSpec((1, ed_p), lambda i, j: (0, 0)),     # bg (resident)
            pl.BlockSpec((ed_p, ts), lambda i, j: (0, j)),    # s_embT tile
        ],
        out_specs=pl.BlockSpec((tg, ts), lambda i, j: (i, j)),
        scratch_shapes=[pltpu.VMEM((tg, ed_p), cd)],          # cached goal emb
        compiler_params=pltpu.CompilerParams(
            # inner (state) axis carries the cached goal embedding in scratch,
            # so it must stay "arbitrary"; the goal axis is "parallel".
            dimension_semantics=("parallel", "arbitrary"),
            vmem_limit_bytes=_vmem_limit(pw_blocks, pw_scratch)),
    )(obj_p, ins_p, p["wgo"], p["wgi"], p["bg"], s_embT)

    # Slice away row/column padding.
    return out_p[:num_goals, :num_states]


# --------------------------------------------------------------------------
# Pure-JAX reference mirroring the PyTorch forward semantics.
# --------------------------------------------------------------------------
def reference_forward(state, objects, instructions, params):
    ws, bs, wg_obj, wg_ins, bg = params
    s_emb = jnp.maximum(state @ ws + bs, 0.0)
    g_emb = jnp.maximum(objects @ wg_obj + instructions @ wg_ins + bg, 0.0)
    num_states, num_goals = s_emb.shape[0], g_emb.shape[0]
    state_rep = jnp.repeat(s_emb[:, None, :], num_goals, axis=1)
    goal_rep = jnp.broadcast_to(
        g_emb[None, :, :], (num_states, num_goals, g_emb.shape[1]))
    values = (state_rep * goal_rep).sum(2)            # (N_s, N_g)
    return values.T                                   # (N_g, N_s)


if __name__ == "__main__":
    root = jax.random.PRNGKey(0)

    def run_case(num_states, num_goals, state_dim, obj_dim, instr_dim,
                 embed_dim, *, compute_dtype=jnp.float32,
                 tile_states=None, tile_goals=None, atol=1e-4, rtol=1e-4,
                 key=root):
        ks = jax.random.split(key, 4)
        state = jax.random.normal(ks[0], (num_states, state_dim), jnp.float32)
        objects = jax.random.normal(ks[1], (num_goals, obj_dim), jnp.float32)
        instructions = jax.random.normal(
            ks[2], (num_goals, instr_dim), jnp.float32)
        params = init_params(ks[3], state_dim, obj_dim, instr_dim, embed_dim)
        prepared = prepare_params(params, compute_dtype=compute_dtype)

        out = compositor_forward(state, objects, instructions, prepared,
                                 tile_states=tile_states, tile_goals=tile_goals)
        out = jax.block_until_ready(out)

        ref = reference_forward(state, objects, instructions, params)
        assert out.shape == (num_goals, num_states)
        err = jnp.max(jnp.abs(out - ref))
        assert jnp.allclose(out, ref, atol=atol, rtol=rtol), f"max abs err {err}"
        return out

    # 1) f32, small unaligned shapes (exercises feature/row padding + slicing).
    run_case(10, 6, 24, 12, 20, 48)

    # 2) f32, multi-tile grid (exercises the g_emb scratch cache across the
    #    inner state sweep and its re-init at each new goal tile).
    run_case(300, 20, 40, 24, 16, 64, tile_states=128, tile_goals=8)

    # 3) bf16 MXU operands on the dominant pairwise matmul (f32 accumulation),
    #    looser tolerance.
    run_case(10, 6, 24, 12, 20, 48, compute_dtype=jnp.bfloat16,
             atol=1e-1, rtol=5e-2)

    print("KERNEL_OK")
</pallas_src>

<mosaic_0001>
module attributes {stable_mosaic.version = 11 : i64} {
  func.func @state_embed_kernel(%arg0: i32, %arg1: memref<128x128xf32, #tpu.memory_space<vmem>>, %arg2: memref<128x128xf32, #tpu.memory_space<vmem>>, %arg3: memref<128x1xf32, #tpu.memory_space<vmem>>, %arg4: memref<128x128xf32, #tpu.memory_space<vmem>>) attributes {dimension_semantics = [#tpu.dimension_semantics<parallel>], iteration_bounds = array<i64: 1>, scalar_prefetch = 0 : i64, scratch_operands = 0 : i64, tpu.core_type = #tpu.core_type<tc>, window_params = [{transform_indices = @transform_0, window_bounds = array<i64: 128, 128>}, {pipeline_mode = #tpu.pipeline_mode<synchronous>, transform_indices = @transform_1, window_bounds = array<i64: 128, 128>}, {pipeline_mode = #tpu.pipeline_mode<synchronous>, transform_indices = @transform_2, window_bounds = array<i64: 128, 1>}, {transform_indices = @transform_3, window_bounds = array<i64: 128, 128>}]} {
    %c0 = arith.constant 0 : index
    %c0_0 = arith.constant 0 : index
    %0 = vector.load %arg2[%c0, %c0_0] : memref<128x128xf32, #tpu.memory_space<vmem>>, vector<128x128xf32>
    %c0_1 = arith.constant 0 : index
    %c0_2 = arith.constant 0 : index
    %1 = vector.load %arg1[%c0_1, %c0_2] : memref<128x128xf32, #tpu.memory_space<vmem>>, vector<128x128xf32>
    %cst = arith.constant dense<0.000000e+00> : vector<128x128xf32>
    %2 = tpu.matmul %0, %1, %cst {dimension_numbers = #tpu.dot_dimension_numbers<[1], [1], [0], [0], [0, 0, 1, 0], [], []>} : vector<128x128xf32>, vector<128x128xf32>, vector<128x128xf32> -> vector<128x128xf32>
    %c0_3 = arith.constant 0 : index
    %c0_4 = arith.constant 0 : index
    %3 = vector.load %arg3[%c0_3, %c0_4] : memref<128x1xf32, #tpu.memory_space<vmem>>, vector<128x1xf32>
    %4 = vector.broadcast %3 : vector<128x1xf32> to vector<128x128xf32>
    %5 = arith.addf %2, %4 : vector<128x128xf32>
    %cst_5 = arith.constant 0.000000e+00 : f32
    %6 = vector.broadcast %cst_5 : f32 to vector<128x128xf32>
    %7 = arith.maximumf %5, %6 : vector<128x128xf32>
    %c0_6 = arith.constant 0 : index
    %c0_7 = arith.constant 0 : index
    %8 = vector.load %arg4[%c0_6, %c0_7] : memref<128x128xf32, #tpu.memory_space<vmem>>, vector<128x128xf32>
    tpu.vector_store %arg4[%c0_6, %c0_7], %7 {strides = array<i32>} : memref<128x128xf32, #tpu.memory_space<vmem>>, vector<128x128xf32>,
    return
  }
  func.func @transform_0(%arg0: i32) -> (i32, i32) {
    %c0_i32 = arith.constant 0 : i32
    %c0_i32_0 = arith.constant 0 : i32
    return %arg0, %c0_i32 : i32, i32
  }
  func.func @transform_1(%arg0: i32) -> (i32, i32) {
    %c0_i32 = arith.constant 0 : i32
    %c0_i32_0 = arith.constant 0 : i32
    %c0_i32_1 = arith.constant 0 : i32
    return %c0_i32, %c0_i32_0 : i32, i32
  }
  func.func @transform_2(%arg0: i32) -> (i32, i32) {
    %c0_i32 = arith.constant 0 : i32
    %c0_i32_0 = arith.constant 0 : i32
    %c0_i32_1 = arith.constant 0 : i32
    return %c0_i32, %c0_i32_0 : i32, i32
  }
  func.func @transform_3(%arg0: i32) -> (i32, i32) {
    %c0_i32 = arith.constant 0 : i32
    %c0_i32_0 = arith.constant 0 : i32
    return %c0_i32, %arg0 : i32, i32
  }
}

</mosaic_0001>

<llo_original>
// kernel: tpu_custom_call.1
$region0: #{tpu_custom_call.1}
  #allocation0 [shape = 'u32[]', space=smem, size = 0x4, offset = 0x4, fixed_abs, tag = 'smem constant byte address 0x4 - core index']
  #allocation1 [shape = 'u32[144,128]{1,0:T(1,128)}', space=vmem, size = 0x12000, scoped, tag = 'internal scratch']
  %s0 = inlined_call_operand.vmem [shape: f32[128,128], index: 0, kind: input, shape index: {}]
  %s1 = inlined_call_operand.hbm [shape: f32[128,128], index: 1, kind: input, shape index: {}]
  %s2 = inlined_call_operand.vmem [shape: f32[128,1], index: 2, kind: input, shape index: {}]
  %s3 = inlined_call_operand.hbm [shape: f32[128,128], index: 3, kind: output, shape index: {}]
  %s4 = sld [smem:[#allocation0]]
  $region26: #{tpu_custom_call.1} parent=0
    _
  %s6 = ssub.s32 1, %s4
  %s7 = scalar_select 0, %s6, %s4
  $region1: #{tpu_custom_call.1} parent=0
    #allocation2 [shape = 'u8[65536]{0}', space=vmem, size = 0x10000, scoped, tag = 'input window, operand 1, single buffered']
    #allocation3 [shape = 's32[1]{0}', space=sflag, size = 0x4, scoped, tag = 'scoped memory for tpu_custom_call.1']
    #allocation4 [shape = 's32[1]{0}', space=sflag, size = 0x4, scoped, tag = 'scoped memory for tpu_custom_call.1']
    #allocation5 [shape = 'u8[65536]{0}', space=vmem, size = 0x10000, scoped, tag = 'output window, operand 0, single buffered']
    %8 = vsyncpa [#allocation3], 0
    %9 = vsyncpa [#allocation4], 0
    // Predicated region
    $region2: #{tpu_custom_call.1} parent=1 // pred_check
      _
    $region3: #{tpu_custom_call.1} parent=1 // pred_check_branch
      %11 = sbr.rel (0) target = $region5
    $region4: #{tpu_custom_call.1} parent=1 // pred_region
      _
    $region5: #{tpu_custom_call.1} parent=1 // pred_fallthru
      _
    // Predicated region
    $region6: #{tpu_custom_call.1} parent=1 // pred_check
      _
    $region7: #{tpu_custom_call.1} parent=1 // pred_check_branch
      %13 = sbr.rel (0) target = $region9
    $region8: #{tpu_custom_call.1} parent=1 // pred_region
      %s15 = ssub.s32 2048, 2048
      %16 = vsyncadd [#allocation3], %s15
      %s17 = sshll.u32 [#allocation2], 4
      %s18 = int_to_ptr.vmem [resolvable:$true] %s17
      %23 = dma.hbm_to_vmem [thread:$0]  %s1, 2048, %s18, [#allocation3], 128, 128, 8
    $region9: #{tpu_custom_call.1} parent=1 // pred_fallthru
      _
    // Predicated region
    $region10: #{tpu_custom_call.1} parent=1 // pred_check
      _
    $region11: #{tpu_custom_call.1} parent=1 // pred_check_branch
      %25 = sbr.rel (0) target = $region13
    $region12: #{tpu_custom_call.1} parent=1 // pred_region
      _
    $region13: #{tpu_custom_call.1} parent=1 // pred_fallthru
      _
    // Predicated region
    $region14: #{tpu_custom_call.1} parent=1 // pred_check
      _
    $region15: #{tpu_custom_call.1} parent=1 // pred_check_branch
      %27 = sbr.rel (0) target = $region17
    $region16: #{tpu_custom_call.1} parent=1 // pred_region
      %28 = dma.done [#allocation3], 2048
    $region17: #{tpu_custom_call.1} parent=1 // pred_fallthru
      _
    %v29 = vld [vmem:[#allocation2] sm:$0xff]
    %v30 = vld [vmem:[#allocation2 + $0x8] sm:$0xff]
    %v31 = vld [vmem:[#allocation2 + $0x10] sm:$0xff]
    %v32 = vld [vmem:[#allocation2 + $0x18] sm:$0xff]
    %v33 = vld [vmem:[#allocation2 + $0x20] sm:$0xff]
    %v34 = vld [vmem:[#allocation2 + $0x28] sm:$0xff]
    %v35 = vld [vmem:[#allocation2 + $0x30] sm:$0xff]
    %v36 = vld [vmem:[#allocation2 + $0x38] sm:$0xff]
    %v37 = vld [vmem:[#allocation2 + $0x40] sm:$0xff]
    %v38 = vld [vmem:[#allocation2 + $0x48] sm:$0xff]
    %v39 = vld [vmem:[#allocation2 + $0x50] sm:$0xff]
    %v40 = vld [vmem:[#allocation2 + $0x58] sm:$0xff]
    %v41 = vld [vmem:[#allocation2 + $0x60] sm:$0xff]
    %v42 = vld [vmem:[#allocation2 + $0x68] sm:$0xff]
    %v43 = vld [vmem:[#allocation2 + $0x70] sm:$0xff]
    %v44 = vld [vmem:[#allocation2 + $0x78] sm:$0xff]
    %v45 = vld [vmem:[%s0] sm:$0xff]
    %v46 = vld [vmem:[%s0 + $0x8] sm:$0xff]
    %v47 = vld [vmem:[%s0 + $0x10] sm:$0xff]
    %v48 = vld [vmem:[%s0 + $0x18] sm:$0xff]
    %v49 = vld [vmem:[%s0 + $0x20] sm:$0xff]
    %v50 = vld [vmem:[%s0 + $0x28] sm:$0xff]
    %v51 = vld [vmem:[%s0 + $0x30] sm:$0xff]
    %v52 = vld [vmem:[%s0 + $0x38] sm:$0xff]
    %v53 = vld [vmem:[%s0 + $0x40] sm:$0xff]
    %v54 = vld [vmem:[%s0 + $0x48] sm:$0xff]
    %v55 = vld [vmem:[%s0 + $0x50] sm:$0xff]
    %v56 = vld [vmem:[%s0 + $0x58] sm:$0xff]
    %v57 = vld [vmem:[%s0 + $0x60] sm:$0xff]
    %v58 = vld [vmem:[%s0 + $0x68] sm:$0xff]
    %v59 = vld [vmem:[%s0 + $0x70] sm:$0xff]
    %v60 = vld [vmem:[%s0 + $0x78] sm:$0xff]
    %v61 = vld [vmem:[%s2] sm:$0xff]
    %v62 = vld [vmem:[%s2 + $0x8] sm:$0xff]
    %v63 = vld [vmem:[%s2 + $0x10] sm:$0xff]
    %v64 = vld [vmem:[%s2 + $0x18] sm:$0xff]
    %v65 = vld [vmem:[%s2 + $0x20] sm:$0xff]
    %v66 = vld [vmem:[%s2 + $0x28] sm:$0xff]
    %v67 = vld [vmem:[%s2 + $0x30] sm:$0xff]
    %v68 = vld [vmem:[%s2 + $0x38] sm:$0xff]
    %v69 = vld [vmem:[%s2 + $0x40] sm:$0xff]
    %v70 = vld [vmem:[%s2 + $0x48] sm:$0xff]
    %v71 = vld [vmem:[%s2 + $0x50] sm:$0xff]
    %v72 = vld [vmem:[%s2 + $0x58] sm:$0xff]
    %v73 = vld [vmem:[%s2 + $0x60] sm:$0xff]
    %v74 = vld [vmem:[%s2 + $0x68] sm:$0xff]
    %v75 = vld [vmem:[%s2 + $0x70] sm:$0xff]
    %v76 = vld [vmem:[%s2 + $0x78] sm:$0xff]
    %78 = vset.pattern.permute.xlu0 0
    %79 = vperm.xlu0 %78, %v61
    %v80 = vpop.permute.xlu0 %79
    %83 = vset.pattern.permute.xlu0 0
    %84 = vperm.xlu0 %83, %v62
    %v85 = vpop.permute.xlu0 %84
    %88 = vset.pattern.permute.xlu0 0
    %89 = vperm.xlu0 %88, %v63
    %v90 = vpop.permute.xlu0 %89
    %93 = vset.pattern.permute.xlu0 0
    %94 = vperm.xlu0 %93, %v64
    %v95 = vpop.permute.xlu0 %94
    %98 = vset.pattern.permute.xlu0 0
    %99 = vperm.xlu0 %98, %v65
    %v100 = vpop.permute.xlu0 %99
    %103 = vset.pattern.permute.xlu0 0
    %104 = vperm.xlu0 %103, %v66
    %v105 = vpop.permute.xlu0 %104
    %108 = vset.pattern.permute.xlu0 0
    %109 = vperm.xlu0 %108, %v67
    %v110 = vpop.permute.xlu0 %109
    %113 = vset.pattern.permute.xlu0 0
    %114 = vperm.xlu0 %113, %v68
    %v115 = vpop.permute.xlu0 %114
    %118 = vset.pattern.permute.xlu0 0
    %119 = vperm.xlu0 %118, %v69
    %v120 = vpop.permute.xlu0 %119
    %123 = vset.pattern.permute.xlu0 0
    %124 = vperm.xlu0 %123, %v70
    %v125 = vpop.permute.xlu0 %124
    %128 = vset.pattern.permute.xlu0 0
    %129 = vperm.xlu0 %128, %v71
    %v130 = vpop.permute.xlu0 %129
    %133 = vset.pattern.permute.xlu0 0
    %134 = vperm.xlu0 %133, %v72
    %v135 = vpop.permute.xlu0 %134
    %138 = vset.pattern.permute.xlu0 0
    %139 = vperm.xlu0 %138, %v73
    %v140 = vpop.permute.xlu0 %139
    %143 = vset.pattern.permute.xlu0 0
    %144 = vperm.xlu0 %143, %v74
    %v145 = vpop.permute.xlu0 %144
    %148 = vset.pattern.permute.xlu0 0
    %149 = vperm.xlu0 %148, %v75
    %v150 = vpop.permute.xlu0 %149
    %153 = vset.pattern.permute.xlu0 0
    %154 = vperm.xlu0 %153, %v76
    %v155 = vpop.permute.xlu0 %154
    %157 = vmatprep.subr.mxu0 0.0
    %158 = vmatpush1.xpose.msra.mxu0 %v45
    %159 = vmatprep.subr.mxu0 0.0
    %160 = vmatpush1.xpose.msra.mxu0 %v46
    %161 = vmatprep.subr.mxu0 0.0
    %162 = vmatpush1.xpose.msra.mxu0 %v47
    %163 = vmatprep.subr.mxu0 0.0
    %164 = vmatpush1.xpose.msra.mxu0 %v48
    %165 = vmatprep.subr.mxu0 0.0
    %166 = vmatpush1.xpose.msra.mxu0 %v49
    %167 = vmatprep.subr.mxu0 0.0
    %168 = vmatpush1.xpose.msra.mxu0 %v50
    %169 = vmatprep.subr.mxu0 0.0
    %170 = vmatpush1.xpose.msra.mxu0 %v51
    %171 = vmatprep.subr.mxu0 0.0
    %172 = vmatpush1.xpose.msra.mxu0 %v52
    %173 = vmatprep.subr.mxu0 0.0
    %174 = vmatpush1.xpose.msra.mxu0 %v53
    %175 = vmatprep.subr.mxu0 0.0
    %176 = vmatpush1.xpose.msra.mxu0 %v54
    %177 = vmatprep.subr.mxu0 0.0
    %178 = vmatpush1.xpose.msra.mxu0 %v55
    %179 = vmatprep.subr.mxu0 0.0
    %180 = vmatpush1.xpose.msra.mxu0 %v56
    %181 = vmatprep.subr.mxu0 0.0
    %182 = vmatpush1.xpose.msra.mxu0 %v57
    %183 = vmatprep.subr.mxu0 0.0
    %184 = vmatpush1.xpose.msra.mxu0 %v58
    %185 = vmatprep.subr.mxu0 0.0
    %186 = vmatpush1.xpose.msra.mxu0 %v59
    %187 = vmatprep.subr.mxu0 0.0
    %188 = vmatpush1.xpose.msra.mxu0 %v60
    %189 = vmatprep.subr.mxu0 0.0
    %190 = vmatpush1.xpose.msra.mxu0 0.0
    %191 = vmatprep.subr.mxu0 0.0
    %192 = vmatpush1.xpose.msra.mxu0 0.0
    %193 = vmatprep.subr.mxu0 0.0
    %194 = vmatpush1.xpose.msra.mxu0 0.0
    %195 = vmatprep.subr.mxu0 0.0
    %196 = vmatpush1.xpose.msra.mxu0 0.0
    %197 = vmatprep.subr.mxu0 0.0
    %198 = vmatpush1.xpose.msra.mxu0 0.0
    %199 = vmatprep.subr.mxu0 0.0
    %200 = vmatpush1.xpose.msra.mxu0 0.0
    %201 = vmatprep.subr.mxu0 0.0
    %202 = vmatpush1.xpose.msra.mxu0 0.0
    %203 = vmatprep.subr.mxu0 0.0
    %204 = vmatpush1.xpose.msra.mxu0 0.0
    %205 = vmatprep.subr.mxu0 0.0
    %206 = vmatpush1.xpose.msra.mxu0 0.0
    %207 = vmatprep.subr.mxu0 0.0
    %208 = vmatpush1.xpose.msra.mxu0 0.0
    %209 = vmatprep.subr.mxu0 0.0
    %210 = vmatpush1.xpose.msra.mxu0 0.0
    %211 = vmatprep.subr.mxu0 0.0
    %212 = vmatpush1.xpose.msra.mxu0 0.0
    %213 = vmatprep.subr.mxu0 0.0
    %214 = vmatpush1.xpose.msra.mxu0 0.0
    %215 = vmatprep.subr.mxu0 0.0
    %216 = vmatpush1.xpose.msra.mxu0 0.0
    %217 = vmatprep.subr.mxu0 0.0
    %218 = vmatpush1.xpose.msra.mxu0 0.0
    %219 = vmatprep.subr.mxu0 0.0
    %220 = vmatpush1.xpose.msra.mxu0 0.0
    %221 = vmatprep.mubr.f32.mxu0 0.0
    %222 = vmatmul.mubr.f32.gmra.mrb[0].mxu0 %v29
    %v223 = vpop.f32.mrb[0].mxu0
    %v224 = vadd.f32 %v80, %v223
    %v225 = vpop.f32.mrb[0].mxu0
    %226 = vmatprep.mubr.f32.mxu0 0.0
    %227 = vmatmul.mubr.f32.gmra.mrb[0].mxu0 %v30
    %v228 = vpop.f32.mrb[0].mxu0
    %v229 = vadd.f32 %v85, %v228
    %v230 = vpop.f32.mrb[0].mxu0
    %231 = vmatprep.mubr.f32.mxu0 0.0
    %232 = vmatmul.mubr.f32.gmra.mrb[0].mxu0 %v31
    %v233 = vpop.f32.mrb[0].mxu0
    %v234 = vadd.f32 %v90, %v233
    %v235 = vpop.f32.mrb[0].mxu0
    %236 = vmatprep.mubr.f32.mxu0 0.0
    %237 = vmatmul.mubr.f32.gmra.mrb[0].mxu0 %v32
    %v238 = vpop.f32.mrb[0].mxu0
    %v239 = vadd.f32 %v95, %v238
    %v240 = vpop.f32.mrb[0].mxu0
    %241 = vmatprep.mubr.f32.mxu0 0.0
    %242 = vmatmul.mubr.f32.gmra.mrb[0].mxu0 %v33
    %v243 = vpop.f32.mrb[0].mxu0
    %v244 = vadd.f32 %v100, %v243
    %v245 = vpop.f32.mrb[0].mxu0
    %246 = vmatprep.mubr.f32.mxu0 0.0
    %247 = vmatmul.mubr.f32.gmra.mrb[0].mxu0 %v34
    %v248 = vpop.f32.mrb[0].mxu0
    %v249 = vadd.f32 %v105, %v248
    %v250 = vpop.f32.mrb[0].mxu0
    %251 = vmatprep.mubr.f32.mxu0 0.0
    %252 = vmatmul.mubr.f32.gmra.mrb[0].mxu0 %v35
    %v253 = vpop.f32.mrb[0].mxu0
    %v254 = vadd.f32 %v110, %v253
    %v255 = vpop.f32.mrb[0].mxu0
    %256 = vmatprep.mubr.f32.mxu0 0.0
    %257 = vmatmul.mubr.f32.gmra.mrb[0].mxu0 %v36
    %v258 = vpop.f32.mrb[0].mxu0
    %v259 = vadd.f32 %v115, %v258
    %v260 = vpop.f32.mrb[0].mxu0
    %261 = vmatprep.mubr.f32.mxu0 0.0
    %262 = vmatmul.mubr.f32.gmra.mrb[0].mxu0 %v37
    %v263 = vpop.f32.mrb[0].mxu0
    %v264 = vadd.f32 %v120, %v263
    %v265 = vpop.f32.mrb[0].mxu0
    %266 = vmatprep.mubr.f32.mxu0 0.0
    %267 = vmatmul.mubr.f32.gmra.mrb[0].mxu0 %v38
    %v268 = vpop.f32.mrb[0].mxu0
    %v269 = vadd.f32 %v125, %v268
    %v270 = vpop.f32.mrb[0].mxu0
    %271 = vmatprep.mubr.f32.mxu0 0.0
    %272 = vmatmul.mubr.f32.gmra.mrb[0].mxu0 %v39
    %v273 = vpop.f32.mrb[0].mxu0
    %v274 = vadd.f32 %v130, %v273
    %v275 = vpop.f32.mrb[0].mxu0
    %276 = vmatprep.mubr.f32.mxu0 0.0
    %277 = vmatmul.mubr.f32.gmra.mrb[0].mxu0 %v40
    %v278 = vpop.f32.mrb[0].mxu0
    %v279 = vadd.f32 %v135, %v278
    %v280 = vpop.f32.mrb[0].mxu0
    %281 = vmatprep.mubr.f32.mxu0 0.0
    %282 = vmatmul.mubr.f32.gmra.mrb[0].mxu0 %v41
    %v283 = vpop.f32.mrb[0].mxu0
    %v284 = vadd.f32 %v140, %v283
    %v285 = vpop.f32.mrb[0].mxu0
    %286 = vmatprep.mubr.f32.mxu0 0.0
    %287 = vmatmul.mubr.f32.gmra.mrb[0].mxu0 %v42
    %v288 = vpop.f32.mrb[0].mxu0
    %v289 = vadd.f32 %v145, %v288
    %v290 = vpop.f32.mrb[0].mxu0
    %291 = vmatprep.mubr.f32.mxu0 0.0
    %292 = vmatmul.mubr.f32.gmra.mrb[0].mxu0 %v43
    %v293 = vpop.f32.mrb[0].mxu0
    %v294 = vadd.f32 %v150, %v293
    %v295 = vpop.f32.mrb[0].mxu0
    %296 = vmatprep.mubr.f32.mxu0 0.0
    %297 = vmatmul.mubr.f32.gmra.mrb[0].mxu0 %v44
    %v298 = vpop.f32.mrb[0].mxu0
    %v299 = vadd.f32 %v155, %v298
    %v300 = vpop.f32.mrb[0].mxu0
    %301 = vdwg.mxu0
    %v302 = vmax.f32 %v224, 0.0
    %v303 = vmax.f32 %v229, 0.0
    %v304 = vmax.f32 %v234, 0.0
    %v305 = vmax.f32 %v239, 0.0
    %v306 = vmax.f32 %v244, 0.0
    %v307 = vmax.f32 %v249, 0.0
    %v308 = vmax.f32 %v254, 0.0
    %v309 = vmax.f32 %v259, 0.0
    %v310 = vmax.f32 %v264, 0.0
    %v311 = vmax.f32 %v269, 0.0
    %v312 = vmax.f32 %v274, 0.0
    %v313 = vmax.f32 %v279, 0.0
    %v314 = vmax.f32 %v284, 0.0
    %v315 = vmax.f32 %v289, 0.0
    %v316 = vmax.f32 %v294, 0.0
    %v317 = vmax.f32 %v299, 0.0
    %318 = vst [vmem:[#allocation5] sm:$0xff] %v302
    %319 = vst [vmem:[#allocation5 + $0x8] sm:$0xff] %v303
    %320 = vst [vmem:[#allocation5 + $0x10] sm:$0xff] %v304
    %321 = vst [vmem:[#allocation5 + $0x18] sm:$0xff] %v305
    %322 = vst [vmem:[#allocation5 + $0x20] sm:$0xff] %v306
    %323 = vst [vmem:[#allocation5 + $0x28] sm:$0xff] %v307
    %324 = vst [vmem:[#allocation5 + $0x30] sm:$0xff] %v308
    %325 = vst [vmem:[#allocation5 + $0x38] sm:$0xff] %v309
    %326 = vst [vmem:[#allocation5 + $0x40] sm:$0xff] %v310
    %327 = vst [vmem:[#allocation5 + $0x48] sm:$0xff] %v311
    %328 = vst [vmem:[#allocation5 + $0x50] sm:$0xff] %v312
    %329 = vst [vmem:[#allocation5 + $0x58] sm:$0xff] %v313
    %330 = vst [vmem:[#allocation5 + $0x60] sm:$0xff] %v314
    %331 = vst [vmem:[#allocation5 + $0x68] sm:$0xff] %v315
    %332 = vst [vmem:[#allocation5 + $0x70] sm:$0xff] %v316
    %333 = vst [vmem:[#allocation5 + $0x78] sm:$0xff] %v317
    // Predicated region
    $region18: #{tpu_custom_call.1} parent=1 // pred_check
      _
    $region19: #{tpu_custom_call.1} parent=1 // pred_check_branch
      %335 = sbr.rel (0) target = $region21
    $region20: #{tpu_custom_call.1} parent=1 // pred_region
      %s337 = ssub.s32 2048, 2048
      %338 = vsyncadd [#allocation4], %s337
      %s339 = sshll.u32 [#allocation5], 4
      %s340 = int_to_ptr.vmem [resolvable:$true] %s339
      %345 = dma.vmem_to_hbm [thread:$0]  %s340, 2048, %s3, [#allocation4], 128, 128, 8
    $region21: #{tpu_custom_call.1} parent=1 // pred_fallthru
      _
    // Predicated region
    $region22: #{tpu_custom_call.1} parent=1 // pred_check
      _
    $region23: #{tpu_custom_call.1} parent=1 // pred_check_branch
      %347 = sbr.rel (0) target = $region25
    $region24: #{tpu_custom_call.1} parent=1 // pred_region
      %348 = dma.done [#allocation4], 2048
    $region25: #{tpu_custom_call.1} parent=1 // pred_fallthru
      _
    %349 = vsyncpa [#allocation3], 1
    %350 = vsyncpa [#allocation4], 1

</llo_original>
